<compile_context>
chip_gen: v5e
topology: v5e:2x2
jax: 0.10.0
libtpu: 0.0.40
codegen_flags: <defaults>
</compile_context>

<pallas_src>
import functools

import jax
import jax.numpy as jnp
from jax.experimental import pallas as pl
from jax.experimental.pallas import tpu as pltpu


def _ce_label_smooth_kernel(x_ref, tgt_ref, out_ref, *, epsilon, num_classes, batch):
    # x_ref:   (TB, C) logits tile (any float dtype) in VMEM
    # tgt_ref: (TB, 1) int32 labels tile in VMEM
    # out_ref: (TB, 1) float32 per-row losses (masked to 0 past the true batch)
    x = x_ref[...].astype(jnp.float32)
    tb, c = x.shape

    # Numerically stable log-softmax pieces (no full (TB, C) log_probs kept live).
    row_max = jnp.max(x, axis=1, keepdims=True)
    shifted = x - row_max                                         # (TB, C)
    lse = jnp.log(jnp.sum(jnp.exp(shifted), axis=1, keepdims=True))   # (TB, 1)
    sum_shifted = jnp.sum(shifted, axis=1, keepdims=True)             # (TB, 1)

    # shifted value at the target class, via one compare+select+reduce pass
    # (replaces the explicit onehot scatter).  Out-of-range targets contribute
    # 0 here, matching the previous kernel's behaviour.
    class_ids = jax.lax.broadcasted_iota(jnp.int32, (tb, c), 1)
    tgt = tgt_ref[...]                                            # (TB, 1) int32
    shifted_at_tgt = jnp.sum(
        jnp.where(class_ids == tgt, shifted, 0.0), axis=1, keepdims=True
    )

    # Per-row smoothed CE:
    #   -(1-eps)*log_probs[tgt] - (eps/C)*sum(log_probs)
    # = (1-eps)*(lse - shifted[tgt]) + (eps/C)*(C*lse - sum(shifted))
    inv_c = epsilon / num_classes
    row_loss = (1.0 - epsilon) * (lse - shifted_at_tgt) + inv_c * (
        num_classes * lse - sum_shifted
    )

    # Mask rows belonging to the padded part of a partial last tile.
    row0 = pl.program_id(0) * tb
    rows = row0 + jax.lax.broadcasted_iota(jnp.int32, (tb, 1), 0)
    out_ref[...] = jnp.where(rows < batch, row_loss, 0.0)


def _choose_tile_rows(b, c):
    """Largest batch tile whose double-buffered footprint fits the VMEM budget."""
    if b <= 8:
        return b  # full-array block (no (8,128) divisibility requirement)
    budget = 16 * 1024 * 1024          # ~half of the 32 MiB scoped-VMEM limit
    per_row = 4 * c + 8                # f32 logits + int32 target + f32 out row
    tb = budget // (2 * per_row)       # 2x for double buffering
    tb = max(8, min(tb, b, 1024))      # >=512-row tiles already ~85% of roofline
    return (tb // 8) * 8


def cross_entropy_label_smooth(inputs, targets, *, num_classes, epsilon=0.1,
                               tile_rows=None):
    """inputs: (B, C) float logits (any float dtype); targets: (B,) int labels.

    Returns the scalar label-smoothed cross-entropy loss.
    """
    b, c = inputs.shape
    assert c == num_classes
    tgt2d = targets.astype(jnp.int32).reshape(b, 1)

    tb = _choose_tile_rows(b, c) if tile_rows is None else int(tile_rows)
    grid = (pl.cdiv(b, tb),)

    kernel = functools.partial(
        _ce_label_smooth_kernel,
        epsilon=float(epsilon),
        num_classes=int(num_classes),
        batch=int(b),
    )

    row_losses = pl.pallas_call(
        kernel,
        out_shape=jax.ShapeDtypeStruct((b, 1), jnp.float32),
        grid_spec=pltpu.PrefetchScalarGridSpec(
            num_scalar_prefetch=0,
            grid=grid,
            in_specs=[
                pl.BlockSpec((tb, c), lambda i: (i, 0)),
                pl.BlockSpec((tb, 1), lambda i: (i, 0)),
            ],
            out_specs=pl.BlockSpec((tb, 1), lambda i: (i, 0)),
        ),
        compiler_params=pltpu.CompilerParams(
            dimension_semantics=("parallel",),
            vmem_limit_bytes=32 * 1024 * 1024,
        ),
    )(inputs, tgt2d)

    # Tiny cross-tile reduction (B floats) done outside the kernel, in f32.
    return jnp.sum(row_losses) / jnp.float32(b)


def _reference(inputs, targets, num_classes, epsilon=0.1):
    log_probs = jax.nn.log_softmax(inputs.astype(jnp.float32), axis=1)
    onehot = jax.nn.one_hot(targets, num_classes, dtype=jnp.float32)
    smooth = (1.0 - epsilon) * onehot + epsilon / num_classes
    return jnp.sum(jnp.mean(-smooth * log_probs, axis=0))


if __name__ == "__main__":
    num_classes = 32
    key = jax.random.PRNGKey(0)

    # (batch, forced tile_rows): second case exercises a multi-step grid with a
    # partial (masked) last tile.
    for batch, tile_rows in ((16, None), (20, 8)):
        k1, k2 = jax.random.split(jax.random.fold_in(key, batch))
        logits = jax.random.normal(k1, (batch, num_classes), dtype=jnp.float32)
        labels = jax.random.randint(k2, (batch,), 0, num_classes, dtype=jnp.int32)

        loss = cross_entropy_label_smooth(
            logits, labels, num_classes=num_classes, epsilon=0.1,
            tile_rows=tile_rows,
        )
        loss = jax.block_until_ready(loss)

        ref = _reference(logits, labels, num_classes, epsilon=0.1)
        assert jnp.allclose(loss, ref, atol=1e-5, rtol=1e-5), (batch, loss, ref)

    print("KERNEL_OK")
</pallas_src>

<mosaic_0001>
module attributes {stable_mosaic.version = 11 : i64} {
  func.func @_ce_label_smooth_kernel(%arg0: i32, %arg1: memref<16x32xf32, #tpu.memory_space<vmem>>, %arg2: memref<16x1xi32, #tpu.memory_space<vmem>>, %arg3: memref<16x1xf32, #tpu.memory_space<vmem>>) attributes {dimension_semantics = [#tpu.dimension_semantics<parallel>], iteration_bounds = array<i64: 1>, scalar_prefetch = 0 : i64, scratch_operands = 0 : i64, tpu.core_type = #tpu.core_type<tc>, window_params = [{transform_indices = @transform_0, window_bounds = array<i64: 16, 32>}, {transform_indices = @transform_1, window_bounds = array<i64: 16, 1>}, {transform_indices = @transform_2, window_bounds = array<i64: 16, 1>}]} {
    %c0 = arith.constant 0 : index
    %c0_0 = arith.constant 0 : index
    %0 = vector.load %arg1[%c0, %c0_0] : memref<16x32xf32, #tpu.memory_space<vmem>>, vector<16x32xf32>
    %cst = arith.constant dense<0xFF800000> : vector<16xf32>
    %1 = vector.multi_reduction <maximumf>, %0, %cst [1] : vector<16x32xf32> to vector<16xf32>
    %2 = vector.shape_cast %1 : vector<16xf32> to vector<16x1xf32>
    %3 = vector.broadcast %2 : vector<16x1xf32> to vector<16x32xf32>
    %4 = arith.subf %0, %3 : vector<16x32xf32>
    %5 = math.exp %4 : vector<16x32xf32>
    %cst_1 = arith.constant dense<0.000000e+00> : vector<16xf32>
    %6 = vector.multi_reduction <add>, %5, %cst_1 [1] : vector<16x32xf32> to vector<16xf32>
    %7 = vector.shape_cast %6 : vector<16xf32> to vector<16x1xf32>
    %8 = math.log %7 : vector<16x1xf32>
    %cst_2 = arith.constant dense<0.000000e+00> : vector<16xf32>
    %9 = vector.multi_reduction <add>, %4, %cst_2 [1] : vector<16x32xf32> to vector<16xf32>
    %10 = vector.shape_cast %9 : vector<16xf32> to vector<16x1xf32>
    %11 = tpu.iota {dimensions = array<i32: 1>} : vector<16x32xi32>
    %c0_3 = arith.constant 0 : index
    %c0_4 = arith.constant 0 : index
    %12 = vector.load %arg2[%c0_3, %c0_4] : memref<16x1xi32, #tpu.memory_space<vmem>>, vector<16x1xi32>
    %13 = vector.broadcast %12 : vector<16x1xi32> to vector<16x32xi32>
    %14 = arith.cmpi eq, %11, %13 : vector<16x32xi32>
    %cst_5 = arith.constant 0.000000e+00 : f32
    %15 = vector.broadcast %cst_5 : f32 to vector<16x32xf32>
    %16 = arith.select %14, %4, %15 : vector<16x32xi1>, vector<16x32xf32>
    %cst_6 = arith.constant dense<0.000000e+00> : vector<16xf32>
    %17 = vector.multi_reduction <add>, %16, %cst_6 [1] : vector<16x32xf32> to vector<16xf32>
    %18 = vector.shape_cast %17 : vector<16xf32> to vector<16x1xf32>
    %19 = arith.subf %8, %18 : vector<16x1xf32>
    %cst_7 = arith.constant 0.899999976 : f32
    %20 = vector.broadcast %cst_7 : f32 to vector<16x1xf32>
    %21 = arith.mulf %20, %19 : vector<16x1xf32>
    %cst_8 = arith.constant 3.200000e+01 : f32
    %22 = vector.broadcast %cst_8 : f32 to vector<16x1xf32>
    %23 = arith.mulf %22, %8 : vector<16x1xf32>
    %24 = arith.subf %23, %10 : vector<16x1xf32>
    %cst_9 = arith.constant 3.125000e-03 : f32
    %25 = vector.broadcast %cst_9 : f32 to vector<16x1xf32>
    %26 = arith.mulf %25, %24 : vector<16x1xf32>
    %27 = arith.addf %21, %26 : vector<16x1xf32>
    %c16_i32 = arith.constant 16 : i32
    %28 = arith.muli %arg0, %c16_i32 : i32
    %29 = tpu.iota {dimensions = array<i32: 0>} : vector<16x1xi32>
    %30 = vector.broadcast %28 : i32 to vector<16x1xi32>
    %31 = arith.addi %30, %29 : vector<16x1xi32>
    %c16_i32_10 = arith.constant 16 : i32
    %32 = vector.broadcast %c16_i32_10 : i32 to vector<16x1xi32>
    %33 = arith.cmpi slt, %31, %32 : vector<16x1xi32>
    %cst_11 = arith.constant 0.000000e+00 : f32
    %34 = vector.broadcast %cst_11 : f32 to vector<16x1xf32>
    %35 = arith.select %33, %27, %34 : vector<16x1xi1>, vector<16x1xf32>
    %c0_12 = arith.constant 0 : index
    %c0_13 = arith.constant 0 : index
    %36 = vector.load %arg3[%c0_12, %c0_13] : memref<16x1xf32, #tpu.memory_space<vmem>>, vector<16x1xf32>
    tpu.vector_store %arg3[%c0_12, %c0_13], %35 {strides = array<i32>} : memref<16x1xf32, #tpu.memory_space<vmem>>, vector<16x1xf32>,
    return
  }
  func.func @transform_0(%arg0: i32) -> (i32, i32) {
    %c0_i32 = arith.constant 0 : i32
    %c0_i32_0 = arith.constant 0 : i32
    return %arg0, %c0_i32 : i32, i32
  }
  func.func @transform_1(%arg0: i32) -> (i32, i32) {
    %c0_i32 = arith.constant 0 : i32
    %c0_i32_0 = arith.constant 0 : i32
    return %arg0, %c0_i32 : i32, i32
  }
  func.func @transform_2(%arg0: i32) -> (i32, i32) {
    %c0_i32 = arith.constant 0 : i32
    %c0_i32_0 = arith.constant 0 : i32
    return %arg0, %c0_i32 : i32, i32
  }
}

</mosaic_0001>

<llo_original>
// kernel: tpu_custom_call.1
$region0: #{tpu_custom_call.1}
  #allocation0 [shape = 'u32[]', space=smem, size = 0x4, offset = 0x4, fixed_abs, tag = 'smem constant byte address 0x4 - core index']
  #allocation1 [shape = 'u32[72,128]{1,0:T(1,128)}', space=vmem, size = 0x9000, scoped, tag = 'internal scratch']
  %s0 = inlined_call_operand.vmem [shape: f32[16,32], index: 0, kind: input, shape index: {}]
  %s1 = inlined_call_operand.vmem [shape: s32[16,1], index: 1, kind: input, shape index: {}]
  %s2 = inlined_call_operand.vmem [shape: f32[16,1], index: 2, kind: output, shape index: {}]
  %s3 = sld [smem:[#allocation0]]
  $region18: #{tpu_custom_call.1} parent=0
    _
  %s5 = ssub.s32 1, %s3
  %s6 = scalar_select 0, %s5, %s3
  // Predicated region
  $region2: #{tpu_custom_call.1} parent=0 // pred_check
    _
  $region3: #{tpu_custom_call.1} parent=0 // pred_check_branch
    %8 = sbr.rel (0) target = $region5
  $region4: #{tpu_custom_call.1} parent=0 // pred_region
    _
  $region5: #{tpu_custom_call.1} parent=0 // pred_fallthru
    _
  // Predicated region
  $region6: #{tpu_custom_call.1} parent=0 // pred_check
    _
  $region7: #{tpu_custom_call.1} parent=0 // pred_check_branch
    %10 = sbr.rel (0) target = $region9
  $region8: #{tpu_custom_call.1} parent=0 // pred_region
    _
  $region9: #{tpu_custom_call.1} parent=0 // pred_fallthru
    _
  %v11 = vld [vmem:[%s0] sm:$0xff]
  %v12 = vld [vmem:[%s0 + $0x8] sm:$0xff]
  %vm13 = vcmask 261120
  %v14 = vsel %vm13, %v11, -inf
  %15 = vmax.xlane.f32.xlu0 %v14
  %v16 = vpop.xlane.xlu0 %15
  %v17 = vsel %vm13, %v12, -inf
  %18 = vmax.xlane.f32.xlu0 %v17
  %v19 = vpop.xlane.xlu0 %18
  %v20 = vsub.f32 %v11, %v16
  %v21 = vsub.f32 %v12, %v19
  %v22 = vmul.f32 %v20, 1.442695
  %v23 = vpow.pop %v22
  %v24 = vmul.f32 %v21, 1.442695
  %v25 = vpow.pop %v24
  %v26 = vsel %vm13, %v23, 0.0
  %27 = vadd.xlane.f32.xlu0 %v26
  %v28 = vpop.xlane.xlu0 %27
  %v29 = vsel %vm13, %v25, 0.0
  %30 = vadd.xlane.f32.xlu0 %v29
  %v31 = vpop.xlane.xlu0 %30
  %v32 = vlog2.pop %v28
  %v33 = vmul.f32 %v32, 0.6931472
  %v34 = vlog2.pop %v31
  %v35 = vmul.f32 %v34, 0.6931472
  %v36 = vsel %vm13, %v20, 0.0
  %37 = vadd.xlane.f32.xlu0 %v36
  %v38 = vpop.xlane.xlu0 %37
  %v39 = vsel %vm13, %v21, 0.0
  %40 = vadd.xlane.f32.xlu0 %v39
  %v41 = vpop.xlane.xlu0 %40
  %v42 = vlaneseq
  %v43 = vand.u32 %v42, 127
  %v44 = vld [vmem:[%s1] sm:$0xff]
  %v45 = vld [vmem:[%s1 + $0x8] sm:$0xff]
  %46 = vset.pattern.permute.xlu0 0
  %47 = vperm.xlu0 %46, %v44
  %v48 = vpop.permute.xlu0 %47
  %49 = vset.pattern.permute.xlu0 0
  %50 = vperm.xlu0 %49, %v45
  %v51 = vpop.permute.xlu0 %50
  %vm52 = vcmp.eq.s32.totalorder %v43, %v48
  %vm53 = vcmp.eq.s32.totalorder %v43, %v51
  %v54 = vsel %vm52, %v20, 0.0
  %v55 = vsel %vm53, %v21, 0.0
  %v56 = vsel %vm13, %v54, 0.0
  %57 = vadd.xlane.f32.xlu0 %v56
  %v58 = vpop.xlane.xlu0 %57
  %v59 = vsel %vm13, %v55, 0.0
  %60 = vadd.xlane.f32.xlu0 %v59
  %v61 = vpop.xlane.xlu0 %60
  %v62 = vsub.f32 %v33, %v58
  %v63 = vsub.f32 %v35, %v61
  %v64 = vmul.f32 %v62, 0.9
  %v65 = vmul.f32 %v63, 0.9
  %v66 = vmul.f32 %v33, 32.0
  %v67 = vmul.f32 %v35, 32.0
  %v68 = vsub.f32 %v66, %v38
  %v69 = vsub.f32 %v67, %v41
  %v70 = vmul.f32 %v68, 0.003125
  %v71 = vmul.f32 %v69, 0.003125
  %v72 = vadd.f32 %v64, %v70
  %v73 = vadd.f32 %v65, %v71
  %s74 = smul.u32 0, 16
  %v75 = vlaneseq
  %v76 = vshrl.u32 %v75, 7
  %v77 = vadd.s32 %v76, 8
  %v78 = vstv %s74
  %v79 = vadd.s32 %v78, %v76
  %v80 = vadd.s32 %v78, %v77
  %vm81 = vcmp.lt.s32.totalorder %v79, 16
  %vm82 = vcmp.lt.s32.totalorder %v80, 16
  %v83 = vsel %vm81, %v72, 0.0
  %v84 = vsel %vm82, %v73, 0.0
  %vm85 = vcmask 7168
  %86 = vst.msk [vmem:[%s2] sm:$0xff] %vm85, %v83
  %87 = vst.msk [vmem:[%s2 + $0x8] sm:$0xff] %vm85, %v84
  // Predicated region
  $region10: #{tpu_custom_call.1} parent=0 // pred_check
    _
  $region11: #{tpu_custom_call.1} parent=0 // pred_check_branch
    %89 = sbr.rel (0) target = $region13
  $region12: #{tpu_custom_call.1} parent=0 // pred_region
    _
  $region13: #{tpu_custom_call.1} parent=0 // pred_fallthru
    _
  // Predicated region
  $region14: #{tpu_custom_call.1} parent=0 // pred_check
    _
  $region15: #{tpu_custom_call.1} parent=0 // pred_check_branch
    %91 = sbr.rel (0) target = $region17
  $region16: #{tpu_custom_call.1} parent=0 // pred_region
    _
  $region17: #{tpu_custom_call.1} parent=0 // pred_fallthru
    _

</llo_original>
